<compile_context>
chip_gen: v6e
topology: v6e:2x2x1
jax: 0.10.0
libtpu: 0.0.40
codegen_flags: <defaults>
</compile_context>

<pallas_src>
import functools

import jax
import jax.numpy as jnp
from jax import lax
from jax.experimental import pallas as pl
from jax.experimental.pallas import tpu as pltpu


# ----------------------------------------------------------------------------
# Pallas kernels
# ----------------------------------------------------------------------------
def _matmul_kernel(x_ref, w_ref, o_ref, acc_ref):
    # x: (tm, tk), w: (tk, tn) -> o: (tm, tn); reduction over grid axis 2.
    @pl.when(pl.program_id(2) == 0)
    def _():
        acc_ref[...] = jnp.zeros_like(acc_ref)

    acc_ref[...] += jnp.dot(
        x_ref[...].astype(jnp.bfloat16),
        w_ref[...].astype(jnp.bfloat16),
        preferred_element_type=jnp.float32,
    )

    @pl.when(pl.program_id(2) == pl.num_programs(2) - 1)
    def _():
        o_ref[...] = acc_ref[...].astype(o_ref.dtype)


def _matmul_bias_kernel(x_ref, w_ref, b_ref, o_ref, acc_ref):
    # Same as _matmul_kernel, bias (1, tn) added at the final reduction step.
    @pl.when(pl.program_id(2) == 0)
    def _():
        acc_ref[...] = jnp.zeros_like(acc_ref)

    acc_ref[...] += jnp.dot(
        x_ref[...].astype(jnp.bfloat16),
        w_ref[...].astype(jnp.bfloat16),
        preferred_element_type=jnp.float32,
    )

    @pl.when(pl.program_id(2) == pl.num_programs(2) - 1)
    def _():
        o_ref[...] = (acc_ref[...] + b_ref[...]).astype(o_ref.dtype)


def _attention_kernel(qkv_ref, bias_ref, o_ref, *, heads, dim_head, scale):
    # qkv_ref: (1, n, 3*H*d) for one batch, bias_ref: (H, n, n),
    # o_ref: (1, n, H*d) lane-dense merged-head output.
    inner = heads * dim_head
    outs = []
    for h in range(heads):                      # static unrolled loop over heads
        lo = h * dim_head
        q = qkv_ref[0, :, lo:lo + dim_head]                                  # (n, d) f32
        k = qkv_ref[0, :, inner + lo:inner + lo + dim_head]                  # (n, d) f32
        v = qkv_ref[0, :, 2 * inner + lo:2 * inner + lo + dim_head]          # (n, d) f32

        # scale folded into q; bf16 operands, f32 MXU accumulation
        qs = (q * scale).astype(jnp.bfloat16)
        s = lax.dot_general(
            qs, k.astype(jnp.bfloat16),
            (((1,), (1,)), ((), ())),           # contract last dims; no k transpose
            preferred_element_type=jnp.float32,
        )                                                                    # (n, n)
        s = s + bias_ref[h]

        # softmax in f32 (v5e has no bf16 VPU/EUP path)
        s = s - jnp.max(s, axis=-1, keepdims=True)
        p = jnp.exp(s)
        p = p * pl.reciprocal(jnp.sum(p, axis=-1, keepdims=True), approx=True)

        outs.append(
            jnp.dot(p.astype(jnp.bfloat16), v.astype(jnp.bfloat16),
                    preferred_element_type=jnp.float32)                      # (n, d)
        )

    # single full-lane-width store of the merged-head layout (n, H*d)
    o_ref[0] = jnp.concatenate(outs, axis=-1).astype(o_ref.dtype)


# ----------------------------------------------------------------------------
# Wrappers
# ----------------------------------------------------------------------------
def _pick_tile(dim, target, align):
    """Largest multiple of `align` dividing `dim` that is <= target; else full dim."""
    if dim <= target or dim % align != 0:
        return dim
    t = (target // align) * align
    while t >= align:
        if dim % t == 0:
            return t
        t -= align
    return dim


def _pallas_matmul(x, w, b=None, *, tm_target=256, tn_target=256, tk_target=512):
    # Tiled matmul (optionally + bias). Tile targets are conservative enough
    # for v7x's 64 MiB VMEM (double-buffered f32 blocks well under budget).
    M, K = x.shape
    K2, N = w.shape
    assert K == K2
    tm = _pick_tile(M, tm_target, 8)
    tn = _pick_tile(N, tn_target, 128)
    tk = _pick_tile(K, tk_target, 128)
    grid = (M // tm, N // tn, K // tk)

    x_spec = pl.BlockSpec((tm, tk), lambda i, j, k: (i, k))
    w_spec = pl.BlockSpec((tk, tn), lambda i, j, k: (k, j))
    o_spec = pl.BlockSpec((tm, tn), lambda i, j, k: (i, j))

    if b is None:
        kernel = _matmul_kernel
        in_specs = [x_spec, w_spec]
        args = (x, w)
    else:
        kernel = _matmul_bias_kernel
        in_specs = [x_spec, w_spec, pl.BlockSpec((1, tn), lambda i, j, k: (0, j))]
        args = (x, w, b.reshape(1, N))

    return pl.pallas_call(
        kernel,
        out_shape=jax.ShapeDtypeStruct((M, N), x.dtype),
        grid_spec=pltpu.PrefetchScalarGridSpec(
            num_scalar_prefetch=0,
            grid=grid,
            in_specs=in_specs,
            out_specs=o_spec,
            scratch_shapes=[pltpu.VMEM((tm, tn), jnp.float32)],
        ),
        compiler_params=pltpu.CompilerParams(
            dimension_semantics=("parallel", "parallel", "arbitrary"),
        ),
    )(*args)


def _pallas_attention(qkv, rel_bias, *, heads, dim_head, scale):
    # qkv: (B, n, 3*H*d), rel_bias: (H, n, n) -> (B, n, H*d)
    B, n, three_inner = qkv.shape
    inner = heads * dim_head
    assert three_inner == 3 * inner
    kernel = functools.partial(
        _attention_kernel, heads=heads, dim_head=dim_head, scale=scale
    )
    return pl.pallas_call(
        kernel,
        out_shape=jax.ShapeDtypeStruct((B, n, inner), qkv.dtype),
        grid_spec=pltpu.PrefetchScalarGridSpec(
            num_scalar_prefetch=0,
            grid=(B,),
            in_specs=[
                pl.BlockSpec((1, n, three_inner), lambda b: (b, 0, 0)),
                # constant block index over the grid -> bias fetched once, stays resident
                pl.BlockSpec((heads, n, n), lambda b: (0, 0, 0)),
            ],
            out_specs=pl.BlockSpec((1, n, inner), lambda b: (b, 0, 0)),
        ),
        compiler_params=pltpu.CompilerParams(
            dimension_semantics=("parallel",),
        ),
    )(qkv, rel_bias)


# ----------------------------------------------------------------------------
# Module: parameter construction + precompute + forward
# ----------------------------------------------------------------------------
def make_attention_params(key, inp, oup, image_size, heads=8, dim_head=32):
    ih, iw = image_size
    inner_dim = dim_head * heads
    k1, k2, k3, k4 = jax.random.split(key, 4)
    return {
        # stored pre-transposed: Linear(inp, inner_dim*3, bias=False)
        "w_qkv": jax.random.normal(k1, (inp, inner_dim * 3), jnp.float32) * 0.02,
        # to_out Linear(inner_dim, oup) with bias
        "w_out": jax.random.normal(k2, (inner_dim, oup), jnp.float32) * 0.02,
        "b_out": jax.random.normal(k3, (oup,), jnp.float32) * 0.02,
        # relative_bias_table: ((2*ih-1)*(2*iw-1), heads)
        "rel_bias_table": jax.random.normal(
            k4, ((2 * ih - 1) * (2 * iw - 1), heads), jnp.float32
        )
        * 0.02,
    }


def _relative_index(ih, iw):
    coords = jnp.stack(
        jnp.meshgrid(jnp.arange(ih), jnp.arange(iw), indexing="ij")
    )                                              # (2, ih, iw)
    coords = coords.reshape(2, -1)                 # (2, n)
    rel = coords[:, :, None] - coords[:, None, :]  # (2, n, n)
    rel = rel.at[0].add(ih - 1)
    rel = rel.at[1].add(iw - 1)
    rel = rel.at[0].multiply(2 * iw - 1)
    rel = jnp.transpose(rel, (1, 2, 0))            # (n, n, 2)
    return rel.sum(-1).reshape(-1)                 # (n*n,)


def make_relative_bias(params, image_size, heads=8):
    """Hoisted, shape-only precompute of the relative position bias -> (H, n, n)."""
    ih, iw = image_size
    n = ih * iw
    rel_idx = _relative_index(ih, iw)                         # (n*n,)
    rel_bias = params["rel_bias_table"][rel_idx]              # (n*n, H)
    return jnp.transpose(rel_bias.reshape(n, n, heads), (2, 0, 1))  # (H, n, n)


def attention_forward(params, x, rel_bias, *, heads=8, dim_head=32):
    # x: (B, n, inp) with n == ih*iw; rel_bias: (H, n, n) precomputed once.
    B, n, inp = x.shape
    inner_dim = dim_head * heads
    scale = dim_head ** -0.5

    # qkv projection (tiled Pallas matmul); keep fused (B, n, 3*inner) layout.
    qkv = _pallas_matmul(x.reshape(B * n, inp), params["w_qkv"])
    qkv = qkv.reshape(B, n, 3 * inner_dim)

    # fused multi-head attention; emits merged-head (B, n, inner) directly.
    out = _pallas_attention(qkv, rel_bias, heads=heads, dim_head=dim_head, scale=scale)

    # output projection (tiled Pallas matmul + bias); dropout(p=0) is identity.
    out = _pallas_matmul(out.reshape(B * n, inner_dim), params["w_out"], params["b_out"])
    return out.reshape(B, n, -1)


# pure-JAX f32 reference (true module semantics) for validation
def attention_reference(params, x, image_size, heads=8, dim_head=32):
    ih, iw = image_size
    B, n, inp = x.shape
    inner_dim = dim_head * heads
    scale = dim_head ** -0.5
    qkv = x @ params["w_qkv"]
    q, k, v = jnp.split(qkv, 3, axis=-1)
    sh = lambda t: jnp.transpose(t.reshape(B, n, heads, dim_head), (0, 2, 1, 3))
    q, k, v = map(sh, (q, k, v))
    dots = jnp.einsum("bhnd,bhmd->bhnm", q, k) * scale
    rel_idx = _relative_index(ih, iw)
    rel_bias = params["rel_bias_table"][rel_idx]
    rel_bias = jnp.transpose(rel_bias.reshape(n, n, heads), (2, 0, 1))[None]
    dots = dots + rel_bias
    attn = jax.nn.softmax(dots, axis=-1)
    out = jnp.einsum("bhnm,bhmd->bhnd", attn, v)
    out = jnp.transpose(out, (0, 2, 1, 3)).reshape(B, n, inner_dim)
    return out @ params["w_out"] + params["b_out"]


if __name__ == "__main__":
    # Small shapes: batch=2, channels(inp)=32, image_size=(4,4) -> seq n=16,
    # heads=8, dim_head=32 -> inner_dim=256, oup=32.
    B, inp, oup = 2, 32, 32
    image_size = (4, 4)
    heads, dim_head = 8, 32
    n = image_size[0] * image_size[1]

    key = jax.random.PRNGKey(0)
    pkey, xkey = jax.random.split(key)
    params = make_attention_params(pkey, inp, oup, image_size, heads, dim_head)
    x = jax.random.normal(xkey, (B, n, inp), jnp.float32)

    rel_bias = make_relative_bias(params, image_size, heads)   # hoisted precompute
    out = attention_forward(params, x, rel_bias, heads=heads, dim_head=dim_head)
    out = jax.block_until_ready(out)

    ref = attention_reference(params, x, image_size, heads, dim_head)
    assert out.shape == (B, n, oup), out.shape
    # bf16 MXU operands + approx reciprocal vs pure-f32 reference -> relaxed tol
    assert jnp.allclose(out, ref, atol=2e-2, rtol=2e-2), "mismatch vs reference"

    print("KERNEL_OK")
</pallas_src>

<mosaic_0001>
module attributes {stable_mosaic.version = 11 : i64} {
  func.func @_matmul_kernel(%arg0: i32, %arg1: i32, %arg2: i32, %arg3: memref<32x32xf32, #tpu.memory_space<vmem>>, %arg4: memref<32x256xf32, #tpu.memory_space<vmem>>, %arg5: memref<32x256xf32, #tpu.memory_space<vmem>>, %arg6: memref<32x256xf32, #tpu.memory_space<vmem>>) attributes {dimension_semantics = [#tpu.dimension_semantics<parallel>, #tpu.dimension_semantics<parallel>, #tpu.dimension_semantics<arbitrary>], iteration_bounds = array<i64: 1, 3, 1>, scalar_prefetch = 0 : i64, scratch_operands = 1 : i64, tpu.core_type = #tpu.core_type<tc>, window_params = [{transform_indices = @transform_0, window_bounds = array<i64: 32, 32>}, {transform_indices = @transform_1, window_bounds = array<i64: 32, 256>}, {transform_indices = @transform_2, window_bounds = array<i64: 32, 256>}]} {
    %c0_i32 = arith.constant 0 : i32
    %0 = arith.cmpi eq, %arg2, %c0_i32 : i32
    %1 = arith.extui %0 : i1 to i32
    %c0_i32_0 = arith.constant 0 : i32
    %2 = arith.cmpi ne, %1, %c0_i32_0 : i32
    scf.if %2 {
      %cst_10 = arith.constant 0.000000e+00 : f32
      %14 = vector.broadcast %cst_10 : f32 to vector<32x256xf32>
      %c0_11 = arith.constant 0 : index
      %c0_12 = arith.constant 0 : index
      %15 = vector.load %arg6[%c0_11, %c0_12] : memref<32x256xf32, #tpu.memory_space<vmem>>, vector<32x256xf32>
      tpu.vector_store %arg6[%c0_11, %c0_12], %14 {strides = array<i32>} : memref<32x256xf32, #tpu.memory_space<vmem>>, vector<32x256xf32>,
    } else {
    }
    %c0 = arith.constant 0 : index
    %c0_1 = arith.constant 0 : index
    %3 = vector.load %arg6[%c0, %c0_1] : memref<32x256xf32, #tpu.memory_space<vmem>>, vector<32x256xf32>
    %c0_2 = arith.constant 0 : index
    %c0_3 = arith.constant 0 : index
    %4 = vector.load %arg3[%c0_2, %c0_3] : memref<32x32xf32, #tpu.memory_space<vmem>>, vector<32x32xf32>
    %5 = arith.truncf %4 : vector<32x32xf32> to vector<32x32xbf16>
    %c0_4 = arith.constant 0 : index
    %c0_5 = arith.constant 0 : index
    %6 = vector.load %arg4[%c0_4, %c0_5] : memref<32x256xf32, #tpu.memory_space<vmem>>, vector<32x256xf32>
    %7 = arith.truncf %6 : vector<32x256xf32> to vector<32x256xbf16>
    %cst = arith.constant dense<0.000000e+00> : vector<32x256xf32>
    %8 = tpu.matmul %5, %7, %cst {dimension_numbers = #tpu.dot_dimension_numbers<[1], [0], [0], [1], [0, 0, 1, 1], [], []>} : vector<32x32xbf16>, vector<32x256xbf16>, vector<32x256xf32> -> vector<32x256xf32>
    %9 = arith.addf %3, %8 : vector<32x256xf32>
    %c0_6 = arith.constant 0 : index
    %c0_7 = arith.constant 0 : index
    %10 = vector.load %arg6[%c0_6, %c0_7] : memref<32x256xf32, #tpu.memory_space<vmem>>, vector<32x256xf32>
    tpu.vector_store %arg6[%c0_6, %c0_7], %9 {strides = array<i32>} : memref<32x256xf32, #tpu.memory_space<vmem>>, vector<32x256xf32>,
    %c0_i32_8 = arith.constant 0 : i32
    %11 = arith.cmpi eq, %arg2, %c0_i32_8 : i32
    %12 = arith.extui %11 : i1 to i32
    %c0_i32_9 = arith.constant 0 : i32
    %13 = arith.cmpi ne, %12, %c0_i32_9 : i32
    scf.if %13 {
      %c0_10 = arith.constant 0 : index
      %c0_11 = arith.constant 0 : index
      %14 = vector.load %arg6[%c0_10, %c0_11] : memref<32x256xf32, #tpu.memory_space<vmem>>, vector<32x256xf32>
      %c0_12 = arith.constant 0 : index
      %c0_13 = arith.constant 0 : index
      %15 = vector.load %arg5[%c0_12, %c0_13] : memref<32x256xf32, #tpu.memory_space<vmem>>, vector<32x256xf32>
      tpu.vector_store %arg5[%c0_12, %c0_13], %14 {strides = array<i32>} : memref<32x256xf32, #tpu.memory_space<vmem>>, vector<32x256xf32>,
    } else {
    }
    return
  }
  func.func @transform_0(%arg0: i32, %arg1: i32, %arg2: i32) -> (i32, i32) {
    %c0_i32 = arith.constant 0 : i32
    return %arg0, %arg2 : i32, i32
  }
  func.func @transform_1(%arg0: i32, %arg1: i32, %arg2: i32) -> (i32, i32) {
    %c0_i32 = arith.constant 0 : i32
    return %arg2, %arg1 : i32, i32
  }
  func.func @transform_2(%arg0: i32, %arg1: i32, %arg2: i32) -> (i32, i32) {
    %c0_i32 = arith.constant 0 : i32
    return %arg0, %arg1 : i32, i32
  }
}

</mosaic_0001>

<llo_original>
// kernel: tpu_custom_call.1
$region0: #{tpu_custom_call.1}
  #allocation0 [shape = 'u32[]', space=smem, size = 0x4, offset = 0x4, fixed_abs, tag = 'smem constant byte address 0x4 - core index']
  #allocation1 [shape = 'u32[144,128]{1,0:T(1,128)}', space=vmem, size = 0x12000, scoped, tag = 'internal scratch']
  #allocation2 [shape = 'f32[32,256]{1,0:T(8,128)}', space=vmem, size = 0x8000, scoped, tag = 'scratch operand']
  %s0 = inlined_call_operand.hbm [shape: f32[32,32], index: 0, kind: input, shape index: {}]
  %s1 = inlined_call_operand.hbm [shape: f32[32,768], index: 1, kind: input, shape index: {}]
  %s2 = inlined_call_operand.hbm [shape: f32[32,768], index: 2, kind: output, shape index: {}]
  %s3 = sld [smem:[#allocation0]]
  $region57: #{tpu_custom_call.1} parent=0
    _
  %s5 = ssub.s32 1, %s3
  %s6 = scalar_select 0, %s5, %s3
  $region1: #{tpu_custom_call.1} parent=0
    #allocation3 [shape = 'u8[16384]{0}', space=vmem, size = 0x4000, scoped, tag = 'input window, operand 0, single buffered']
    #allocation4 [shape = 's32[2]{0}', space=sflag, size = 0x8, scoped, tag = 'scoped memory for tpu_custom_call.1']
    #allocation5 [shape = 's32[2]{0}', space=sflag, size = 0x8, scoped, tag = 'scoped memory for tpu_custom_call.1']
    #allocation6 [shape = 'u8[65536]{0}', space=vmem, size = 0x10000, scoped, tag = 'input window, operand 1']
    #allocation7 [shape = 's32[2]{0}', space=sflag, size = 0x8, scoped, tag = 'scoped memory for tpu_custom_call.1']
    #allocation8 [shape = 'u8[65536]{0}', space=vmem, size = 0x10000, scoped, tag = 'output window, operand 0']
    %7 = vsyncpa [#allocation4], 0
    %8 = vsyncpa [#allocation7], 0
    %s9 = scalar_lea.sflag [#allocation7], 1
    %10 = vsyncpa %s9, 0
    %11 = vsyncpa [#allocation5], 0
    %s12 = scalar_lea.sflag [#allocation5], 1
    %13 = vsyncpa %s12, 0
    loop: start=0, step=1, limit=5
    $region2: #{tpu_custom_call.1} parent=1 // loop_pre_header
      _
    $region3: #{tpu_custom_call.1} parent=1 // loop_header
      %s15 = sphi 0, %s19
      %p16 = scmp.ge.s32.totalorder %s15, 5
      %s22 = sphi 0, %s41
      %s23 = sphi 0, %s37
      %s24 = sphi 0, %s33
      %s25 = sphi 0, %s22
      %s26 = sphi 0, %s23
      %s27 = sphi 0, %s24
      %s28 = sphi 0, %s25
      %s29 = sphi 0, %s26
      %s30 = sphi 0, %s27
      %s46 = sphi 0, %s48
      %s49 = sphi 0, %s46
      %s50 = sphi 0, %s49
      %s66 = sphi 0, %s50
      %s74 = sphi 0, %s76
      %s77 = sphi 0, %s74
      %s78 = sphi 0, %s77
      %s94 = sphi 0, %s78
      %s102 = sphi 0, %s104
      %s105 = sphi 0, %s102
      %s106 = sphi 0, %s105
      %s122 = sphi 0, %s106
    $region4: #{tpu_custom_call.1} parent=1 // loop_header_branch
      %18 = sbr.rel (%p16) target = $region8
    $region5: #{tpu_custom_call.1} parent=1 // loop_body
      %s20 = ssub.s32 %s15, 1
      %s21 = ssub.s32 %s15, 2
      %s31 = sadd.s32 1, %s24
      %p32 = scmp.ge.s32.totalorder %s31, 1
      %s33 = scalar_select %p32, 0, %s31
      %s34 = sadd.s32 1, %s23
      %s35 = scalar_select %p32, %s34, %s23
      %p36 = scmp.ge.s32.totalorder %s35, 3
      %s37 = scalar_select %p36, 0, %s35
      %s38 = sadd.s32 1, %s22
      %s39 = scalar_select %p36, %s38, %s22
      %p40 = scmp.ge.s32.totalorder %s39, 1
      %s41 = scalar_select %p40, 0, %s39
      %s42 = ssub.s32 %s22, %s41
      %s43 = ssub.s32 %s24, %s33
      %s44 = sor.u32 %s42, %s43
      %p45 = scmp.eq.s32.totalorder %s44, 0
      %s47 = sadd.s32 %s46, 1
      %s48 = scalar_select %p45, %s46, %s47
      %p51 = pneg %p45
      %p52 = scmp.eq.s32.totalorder %s15, 2
      %p53 = por %p51, %p52
      %p54 = scmp.ne.s32.totalorder %s46, %s49
      %p55 = scmp.eq.s32.totalorder %s15, 0
      %p56 = por %p54, %p55
      %p57 = scmp.ne.s32.totalorder %s46, %s49
      %p58 = scmp.eq.s32.totalorder %s20, 2
      %p59 = por %p57, %p58
      %p60 = scmp.ne.s32.totalorder %s49, %s50
      %p61 = scmp.eq.s32.totalorder %s20, 0
      %p62 = por %p60, %p61
      %p63 = scmp.ne.s32.totalorder %s49, %s50
      %p64 = scmp.eq.s32.totalorder %s21, 2
      %p65 = por %p63, %p64
      %p67 = scmp.ne.s32.totalorder %s50, %s66
      %p68 = scmp.eq.s32.totalorder %s21, 0
      %p69 = por %p67, %p68
      %s70 = ssub.s32 %s24, %s33
      %s71 = ssub.s32 %s23, %s37
      %s72 = sor.u32 %s70, %s71
      %p73 = scmp.eq.s32.totalorder %s72, 0
      %s75 = sadd.s32 %s74, 1
      %s76 = scalar_select %p73, %s74, %s75
      %p79 = pneg %p73
      %p80 = scmp.eq.s32.totalorder %s15, 2
      %p81 = por %p79, %p80
      %p82 = scmp.ne.s32.totalorder %s74, %s77
      %p83 = scmp.eq.s32.totalorder %s15, 0
      %p84 = por %p82, %p83
      %p85 = scmp.ne.s32.totalorder %s74, %s77
      %p86 = scmp.eq.s32.totalorder %s20, 2
      %p87 = por %p85, %p86
      %p88 = scmp.ne.s32.totalorder %s77, %s78
      %p89 = scmp.eq.s32.totalorder %s20, 0
      %p90 = por %p88, %p89
      %p91 = scmp.ne.s32.totalorder %s77, %s78
      %p92 = scmp.eq.s32.totalorder %s21, 2
      %p93 = por %p91, %p92
      %p95 = scmp.ne.s32.totalorder %s78, %s94
      %p96 = scmp.eq.s32.totalorder %s21, 0
      %p97 = por %p95, %p96
      %s98 = ssub.s32 %s22, %s41
      %s99 = ssub.s32 %s23, %s37
      %s100 = sor.u32 %s98, %s99
      %p101 = scmp.eq.s32.totalorder %s100, 0
      %s103 = sadd.s32 %s102, 1
      %s104 = scalar_select %p101, %s102, %s103
      %p107 = pneg %p101
      %p108 = scmp.eq.s32.totalorder %s15, 2
      %p109 = por %p107, %p108
      %p110 = scmp.ne.s32.totalorder %s102, %s105
      %p111 = scmp.eq.s32.totalorder %s15, 0
      %p112 = por %p110, %p111
      %p113 = scmp.ne.s32.totalorder %s102, %s105
      %p114 = scmp.eq.s32.totalorder %s20, 2
      %p115 = por %p113, %p114
      %p116 = scmp.ne.s32.totalorder %s105, %s106
      %p117 = scmp.eq.s32.totalorder %s20, 0
      %p118 = por %p116, %p117
      %p119 = scmp.ne.s32.totalorder %s105, %s106
      %p120 = scmp.eq.s32.totalorder %s21, 2
      %p121 = por %p119, %p120
      %p123 = scmp.ne.s32.totalorder %s106, %s122
      %p124 = scmp.eq.s32.totalorder %s21, 0
      %p125 = por %p123, %p124
      %p126 = scmp.le.s32.totalorder 1, %s15
      %p127 = scmp.lt.s32.totalorder %s15, 4
      %p128 = pnand %p126, %p127
      %p129 = pneg %p128
      // Predicated region
      $region9: #{tpu_custom_call.1} parent=5 // pred_check
        _
      $region10: #{tpu_custom_call.1} parent=5 // pred_check_branch
        %131 = sbr.rel (%p128) target = $region12
      $region11: #{tpu_custom_call.1} parent=5 // pred_region
        %s132 = ssub.s32 %s15, 1
        // Predicated region
        $region13: #{tpu_custom_call.1} parent=11 // pred_check
          %p133 = pneg %p62
        $region14: #{tpu_custom_call.1} parent=11 // pred_check_branch
          %135 = sbr.rel (%p133) target = $region16
        $region15: #{tpu_custom_call.1} parent=11 // pred_region
          %s136 = smul.u32 4, %s25
          %s138 = ssub.s32 512, 512
          %139 = vsyncadd [#allocation4], %s138
          %s140 = sadd.s32 %s27, %s136
          %s141 = smul.addr %s140, 128
          %s142 = scalar_lea.hbm %s0, %s141
          %s143 = sshll.u32 [#allocation3], 4
          %s144 = int_to_ptr.vmem [resolvable:$true] %s143
          %149 = dma.hbm_to_vmem [thread:$0]  %s142, 512, %s144, [#allocation4], 128, 128, 8
        $region16: #{tpu_custom_call.1} parent=11 // pred_fallthru
          _
      $region12: #{tpu_custom_call.1} parent=5 // pred_fallthru
        _
      %p150 = scmp.lt.s32.totalorder %s15, 3
      // Predicated region
      $region17: #{tpu_custom_call.1} parent=5 // pred_check
        %p151 = pneg %p150
      $region18: #{tpu_custom_call.1} parent=5 // pred_check_branch
        %153 = sbr.rel (%p151) target = $region20
      $region19: #{tpu_custom_call.1} parent=5 // pred_region
        // Predicated region
        $region21: #{tpu_custom_call.1} parent=19 // pred_check
          %p154 = pneg %p84
        $region22: #{tpu_custom_call.1} parent=19 // pred_check_branch
          %156 = sbr.rel (%p154) target = $region24
        $region23: #{tpu_custom_call.1} parent=19 // pred_region
          %s157 = sand.u32 %s74, 1
          %s158 = scalar_lea.sflag [#allocation7], %s157
          %s159 = sand.u32 %s74, 1
          %s160 = smul.addr %s159, 64
          %s161 = scalar_lea.vmem [#allocation6], %s160
          %s162 = smul.u32 4, %s24
          %s163 = smul.u32 2, %s23
          %s165 = ssub.s32 1024, 1024
          %166 = vsyncadd %s158, %s165
          %s167 = smul.addr %s162, 6
          %s168 = sadd.s32 %s163, %s167
          %s169 = smul.addr %s168, 128
          %s170 = scalar_lea.hbm %s1, %s169
          %s171 = sshll.u32 %s161, 4
          %s172 = int_to_ptr.vmem [resolvable:$true] %s171
          %177 = dma.hbm_to_vmem [thread:$0]  %s170, 1024, %s172, %s158, 768, 256, 16
        $region24: #{tpu_custom_call.1} parent=19 // pred_fallthru
          _
      $region20: #{tpu_custom_call.1} parent=5 // pred_fallthru
        _
      %p178 = scmp.le.s32.totalorder 1, %s15
      %p179 = scmp.lt.s32.totalorder %s15, 4
      %p180 = pnand %p178, %p179
      %p181 = pneg %p180
      // Predicated region
      $region25: #{tpu_custom_call.1} parent=5 // pred_check
        _
      $region26: #{tpu_custom_call.1} parent=5 // pred_check_branch
        %183 = sbr.rel (%p180) target = $region28
      $region27: #{tpu_custom_call.1} parent=5 // pred_region
        %s184 = ssub.s32 %s15, 1
        // Predicated region
        $region29: #{tpu_custom_call.1} parent=27 // pred_check
          %p185 = pneg %p62
        $region30: #{tpu_custom_call.1} parent=27 // pred_check_branch
          %187 = sbr.rel (%p185) target = $region32
        $region31: #{tpu_custom_call.1} parent=27 // pred_region
          %188 = dma.done [#allocation4], 512
        $region32: #{tpu_custom_call.1} parent=27 // pred_fallthru
          _
        %s189 = sand.u32 %s77, 1
        %s190 = scalar_lea.sflag [#allocation7], %s189
        %s191 = sand.u32 %s77, 1
        %s192 = smul.addr %s191, 64
        %s193 = scalar_lea.vmem [#allocation6], %s192
        // Predicated region
        $region33: #{tpu_custom_call.1} parent=27 // pred_check
          %p194 = pneg %p90
        $region34: #{tpu_custom_call.1} parent=27 // pred_check_branch
          %196 = sbr.rel (%p194) target = $region36
        $region35: #{tpu_custom_call.1} parent=27 // pred_region
          %197 = dma.done %s190, 1024
        $region36: #{tpu_custom_call.1} parent=27 // pred_fallthru
          _
        %p198 = pneg %p62
        %p199 = pneg %p59
        %s200 = sand.u32 %s77, 1
        %s201 = scalar_lea.sflag [#allocation7], %s200
        %s202 = sand.u32 %s77, 1
        %s203 = smul.addr %s202, 64
        %s204 = scalar_lea.vmem [#allocation6], %s203
        %p205 = pneg %p90
        %p206 = pneg %p87
        %p207 = pneg %p118
        %p208 = pneg %p115
        %s209 = sand.u32 %s105, 1
        %s210 = scalar_lea.sflag [#allocation5], %s209
        %s211 = sand.u32 %s105, 1
        %s212 = smul.addr %s211, 64
        %s213 = scalar_lea.vmem [#allocation8], %s212
        %s214 = smul.u32 4, %s25
        %s215 = smul.u32 4, %s27
        %s216 = smul.u32 2, %s26
        %s217 = smul.u32 4, %s25
        %s218 = smul.u32 2, %s26
        %p220 = scmp.eq.s32.totalorder %s27, 0
        // Predicated region
        $region37: #{tpu_custom_call.1} parent=27 // pred_check
          %p221 = pneg %p220
        $region38: #{tpu_custom_call.1} parent=27 // pred_check_branch
          %223 = sbr.rel (%p221) target = $region40
        $region39: #{tpu_custom_call.1} parent=27 // pred_region
          %224 = vst [vmem:[#allocation2] sm:$0xff] 0.0
          %225 = vst [vmem:[#allocation2 + $0x8] sm:$0xff] 0.0
          %226 = vst [vmem:[#allocation2 + $0x10] sm:$0xff] 0.0
          %227 = vst [vmem:[#allocation2 + $0x18] sm:$0xff] 0.0
          %228 = vst [vmem:[#allocation2 + $0x20] sm:$0xff] 0.0
          %229 = vst [vmem:[#allocation2 + $0x28] sm:$0xff] 0.0
          %230 = vst [vmem:[#allocation2 + $0x30] sm:$0xff] 0.0
          %231 = vst [vmem:[#allocation2 + $0x38] sm:$0xff] 0.0
        $region40: #{tpu_custom_call.1} parent=27 // pred_fallthru
          _
        %v232 = vld [vmem:[#allocation2] sm:$0xff]
        %v233 = vld [vmem:[#allocation2 + $0x8] sm:$0xff]
        %v234 = vld [vmem:[#allocation2 + $0x10] sm:$0xff]
        %v235 = vld [vmem:[#allocation2 + $0x18] sm:$0xff]
        %v236 = vld [vmem:[#allocation2 + $0x20] sm:$0xff]
        %v237 = vld [vmem:[#allocation2 + $0x28] sm:$0xff]
        %v238 = vld [vmem:[#allocation2 + $0x30] sm:$0xff]
        %v239 = vld [vmem:[#allocation2 + $0x38] sm:$0xff]
        %v240 = vld [vmem:[#allocation3] sm:$0xff]
        %v241 = vld [vmem:[#allocation3 + $0x8] sm:$0xff]
        %v242 = vld [vmem:[#allocation3 + $0x10] sm:$0xff]
        %v243 = vld [vmem:[#allocation3 + $0x18] sm:$0xff]
        %v244 = vpack.c.bf16 %v241, %v240
        %v245 = vpack.c.bf16 %v243, %v242
        %v246 = vld [vmem:[%s193] sm:$0xff]
        %v247 = vld [vmem:[%s193 + $0x8] sm:$0xff]
        %v248 = vld [vmem:[%s193 + $0x10] sm:$0xff]
        %v249 = vld [vmem:[%s193 + $0x18] sm:$0xff]
        %v250 = vld [vmem:[%s193 + $0x20] sm:$0xff]
        %v251 = vld [vmem:[%s193 + $0x28] sm:$0xff]
        %v252 = vld [vmem:[%s193 + $0x30] sm:$0xff]
        %v253 = vld [vmem:[%s193 + $0x38] sm:$0xff]
        %v254 = vpack.c.bf16 %v248, %v246
        %v255 = vpack.c.bf16 %v249, %v247
        %v256 = vpack.c.bf16 %v252, %v250
        %v257 = vpack.c.bf16 %v253, %v251
        %vm258 = vcmask 261120
        %v260 = vsel %vm258, %v244, 0
        %v263 = vsel %vm258, %v245, 0
        %265 = vmatprep.subr.bf16.mxu0 0
        %266 = vmatpush1.bf16.msra.mxu0 0
        %267 = vmatprep.subr.bf16.mxu0 0
        %268 = vmatpush1.bf16.msra.mxu0 0
        %269 = vmatprep.subr.bf16.mxu0 0
        %270 = vmatpush1.bf16.msra.mxu0 0
        %271 = vmatprep.subr.bf16.mxu0 0
        %272 = vmatpush1.bf16.msra.mxu0 0
        %273 = vmatprep.subr.bf16.mxu0 0
        %274 = vmatpush1.bf16.msra.mxu0 0
        %275 = vmatprep.subr.bf16.mxu0 0
        %276 = vmatpush1.bf16.msra.mxu0 0
        %277 = vmatprep.subr.bf16.mxu0 %v257
        %278 = vmatpush1.bf16.msra.mxu0 %v256
        %279 = vmatprep.subr.bf16.mxu0 %v255
        %280 = vmatpush1.bf16.msra.mxu0 %v254
        %281 = vmatprep.subr.bf16.mxu0 0
        %282 = vmatpush2.bf16.msra.mxu0 0
        %283 = vmatprep.subr.bf16.mxu0 0
        %284 = vmatpush2.bf16.msra.mxu0 0
        %285 = vmatprep.subr.bf16.mxu0 0
        %286 = vmatpush2.bf16.msra.mxu0 0
        %287 = vmatprep.subr.bf16.mxu0 0
        %288 = vmatpush2.bf16.msra.mxu0 0
        %289 = vmatprep.subr.bf16.mxu0 0
        %290 = vmatpush2.bf16.msra.mxu0 0
        %291 = vmatprep.subr.bf16.mxu0 0
        %292 = vmatpush2.bf16.msra.mxu0 0
        %293 = vmatprep.subr.bf16.mxu0 0
        %294 = vmatpush2.bf16.msra.mxu0 0
        %295 = vmatprep.subr.bf16.mxu0 0
        %296 = vmatpush2.bf16.msra.mxu0 0
        %297 = vmatprep.mubr.bf16.mxu0 0
        %298 = vmatmul.mubr.bf16.gmra.mxu0 %v260
        %v299 = vpop.f32.mrf.mxu0
        %v300 = vadd.f32 0.0, %v299
        %v301 = vpop.f32.mrf.mxu0
        %v302 = vadd.f32 0.0, %v301
        %v303 = vpop.f32.mrf.mxu0
        %v304 = vadd.f32 0.0, %v303
        %v305 = vpop.f32.mrf.mxu0
        %v306 = vadd.f32 0.0, %v305
        %307 = vmatprep.mubr.bf16.mxu0 0
        %308 = vmatmul.mubr.bf16.gmra.mxu0 %v263
        %v309 = vpop.f32.mrf.mxu0
        %v310 = vadd.f32 0.0, %v309
        %v311 = vpop.f32.mrf.mxu0
        %v312 = vadd.f32 0.0, %v311
        %v313 = vpop.f32.mrf.mxu0
        %v314 = vadd.f32 0.0, %v313
        %v315 = vpop.f32.mrf.mxu0
        %v316 = vadd.f32 0.0, %v315
        %317 = vdwg.mxu0
        %v318 = vadd.f32 %v232, %v300
        %v319 = vadd.f32 %v233, %v302
        %v320 = vadd.f32 %v234, %v304
        %v321 = vadd.f32 %v235, %v306
        %v322 = vadd.f32 %v236, %v310
        %v323 = vadd.f32 %v237, %v312
        %v324 = vadd.f32 %v238, %v314
        %v325 = vadd.f32 %v239, %v316
        %326 = vst [vmem:[#allocation2] sm:$0xff] %v318
        %327 = vst [vmem:[#allocation2 + $0x8] sm:$0xff] %v319
        %328 = vst [vmem:[#allocation2 + $0x10] sm:$0xff] %v320
        %329 = vst [vmem:[#allocation2 + $0x18] sm:$0xff] %v321
        %330 = vst [vmem:[#allocation2 + $0x20] sm:$0xff] %v322
        %331 = vst [vmem:[#allocation2 + $0x28] sm:$0xff] %v323
        %332 = vst [vmem:[#allocation2 + $0x30] sm:$0xff] %v324
        %333 = vst [vmem:[#allocation2 + $0x38] sm:$0xff] %v325
        // Predicated region
        $region41: #{tpu_custom_call.1} parent=27 // pred_check
          %p334 = pneg %p220
        $region42: #{tpu_custom_call.1} parent=27 // pred_check_branch
          %336 = sbr.rel (%p334) target = $region44
        $region43: #{tpu_custom_call.1} parent=27 // pred_region
          %v337 = vld [vmem:[#allocation2] sm:$0xff]
          %v338 = vld [vmem:[#allocation2 + $0x8] sm:$0xff]
          %v339 = vld [vmem:[#allocation2 + $0x10] sm:$0xff]
          %v340 = vld [vmem:[#allocation2 + $0x18] sm:$0xff]
          %v341 = vld [vmem:[#allocation2 + $0x20] sm:$0xff]
          %v342 = vld [vmem:[#allocation2 + $0x28] sm:$0xff]
          %v343 = vld [vmem:[#allocation2 + $0x30] sm:$0xff]
          %v344 = vld [vmem:[#allocation2 + $0x38] sm:$0xff]
          %345 = vst [vmem:[%s213] sm:$0xff] %v337
          %346 = vst [vmem:[%s213 + $0x8] sm:$0xff] %v338
          %347 = vst [vmem:[%s213 + $0x10] sm:$0xff] %v339
          %348 = vst [vmem:[%s213 + $0x18] sm:$0xff] %v340
          %349 = vst [vmem:[%s213 + $0x20] sm:$0xff] %v341
          %350 = vst [vmem:[%s213 + $0x28] sm:$0xff] %v342
          %351 = vst [vmem:[%s213 + $0x30] sm:$0xff] %v343
          %352 = vst [vmem:[%s213 + $0x38] sm:$0xff] %v344
        $region44: #{tpu_custom_call.1} parent=27 // pred_fallthru
          _
        %s353 = sand.u32 %s105, 1
        %s354 = scalar_lea.sflag [#allocation5], %s353
        %s355 = sand.u32 %s105, 1
        %s356 = smul.addr %s355, 64
        %s357 = scalar_lea.vmem [#allocation8], %s356
        // Predicated region
        $region45: #{tpu_custom_call.1} parent=27 // pred_check
          %p358 = pneg %p115
        $region46: #{tpu_custom_call.1} parent=27 // pred_check_branch
          %360 = sbr.rel (%p358) target = $region48
        $region47: #{tpu_custom_call.1} parent=27 // pred_region
          %s361 = smul.u32 4, %s25
          %s362 = smul.u32 2, %s26
          %s364 = ssub.s32 1024, 1024
          %365 = vsyncadd %s354, %s364
          %s366 = smul.addr %s361, 6
          %s367 = sadd.s32 %s362, %s366
          %s368 = smul.addr %s367, 128
          %s369 = scalar_lea.hbm %s2, %s368
          %s370 = sshll.u32 %s357, 4
          %s371 = int_to_ptr.vmem [resolvable:$true] %s370
          %376 = dma.vmem_to_hbm [thread:$0]  %s371, 1024, %s369, %s354, 256, 768, 16
        $region48: #{tpu_custom_call.1} parent=27 // pred_fallthru
          _
      $region28: #{tpu_custom_call.1} parent=5 // pred_fallthru
        _
      %p377 = scmp.le.s32.totalorder 2, %s15
      // Predicated region
      $region49: #{tpu_custom_call.1} parent=5 // pred_check
        %p378 = pneg %p377
      $region50: #{tpu_custom_call.1} parent=5 // pred_check_branch
        %380 = sbr.rel (%p378) target = $region52
      $region51: #{tpu_custom_call.1} parent=5 // pred_region
        %s381 = ssub.s32 %s15, 2
        // Predicated region
        $region53: #{tpu_custom_call.1} parent=51 // pred_check
          %p382 = pneg %p121
        $region54: #{tpu_custom_call.1} parent=51 // pred_check_branch
          %384 = sbr.rel (%p382) target = $region56
        $region55: #{tpu_custom_call.1} parent=51 // pred_region
          %s385 = sand.u32 %s106, 1
          %s386 = scalar_lea.sflag [#allocation5], %s385
          %s387 = sand.u32 %s106, 1
          %s388 = smul.addr %s387, 64
          %s389 = scalar_lea.vmem [#allocation8], %s388
          %390 = dma.done %s386, 1024
        $region56: #{tpu_custom_call.1} parent=51 // pred_fallthru
          _
      $region52: #{tpu_custom_call.1} parent=5 // pred_fallthru
        _
    $region6: #{tpu_custom_call.1} parent=1 // loop_footer
      %s19 = sadd.s32 1, %s15
    $region7: #{tpu_custom_call.1} parent=1 // loop_footer_branch
      %14 = sbr.rel target = $region3
    $region8: #{tpu_custom_call.1} parent=1 // loop_exit
      _
    %391 = vsyncpa [#allocation4], 1
    %s392 = scalar_lea.sflag [#allocation4], 1
    %393 = vsyncpa %s392, 1
    %394 = vsyncpa [#allocation7], 1
    %s395 = scalar_lea.sflag [#allocation7], 1
    %396 = vsyncpa %s395, 1
    %397 = vsyncpa [#allocation5], 1
    %s398 = scalar_lea.sflag [#allocation5], 1
    %399 = vsyncpa %s398, 1

</llo_original>
